<compile_context>
chip_gen: v5e
topology: v5e:2x2
jax: 0.10.0
libtpu: 0.0.40
codegen_flags: <defaults>
</compile_context>

<pallas_src>
import functools
import math

import jax
import jax.numpy as jnp
from jax import lax
from jax.experimental import pallas as pl
from jax.experimental.pallas import tpu as pltpu

# Finite "minus infinity" for padded key columns (avoids any inf-inf NaN edge cases when
# a trailing kv tile is fully padded, which can happen now that tq != tk).
_MASK_VALUE = -1e30


def _round_up(x, m):
    return ((x + m - 1) // m) * m


@functools.lru_cache(maxsize=1)
def _vmem_limit_bytes():
    """~Half of physical VMEM: 64 MiB on 128-MiB parts (v5e/v6e), 32 MiB on v7x."""
    try:
        cap = int(pltpu.get_tpu_info().vmem_capacity_bytes)
    except Exception:
        cap = 128 * 1024 * 1024
    return max(32 * 1024 * 1024, min(cap // 2, 100 * 1024 * 1024))


# ---------------------------------------------------------------------------
# Kernel 1: QKV projection, emitted directly in the (B, 3H, S_pad, hd) flash layout
# ---------------------------------------------------------------------------
def _qkv_proj_kernel(x_ref, w_ref, b_ref, o_ref, *, num_heads, head_dim):
    x = x_ref[0]                                            # (tm, E) bf16
    for t in range(3):                                      # 0: Q (pre-scaled), 1: K, 2: V
        # Full-depth, E-wide MXU matmul against the resident weight slab.
        r = jnp.dot(x, w_ref[t], preferred_element_type=jnp.float32)   # (tm, E) f32
        r = (r + b_ref[t]).astype(o_ref.dtype)
        for h in range(num_heads):                          # head-major split, static slices
            o_ref[0, t * num_heads + h] = r[:, h * head_dim:(h + 1) * head_dim]


def _qkv_projection(x, w3, b3, *, num_heads, head_dim, tm):
    B, S_pad, E = x.shape
    H3 = 3 * num_heads
    flops = int(2 * B * S_pad * E * 3 * E)
    bytes_accessed = int((B * S_pad * E + 3 * E * E + B * S_pad * 3 * E) * 2 + 3 * E * 4)
    kernel = functools.partial(_qkv_proj_kernel, num_heads=num_heads, head_dim=head_dim)
    return pl.pallas_call(
        kernel,
        out_shape=jax.ShapeDtypeStruct((B, H3, S_pad, head_dim), x.dtype),
        grid_spec=pltpu.PrefetchScalarGridSpec(
            num_scalar_prefetch=0,
            grid=(B, S_pad // tm),
            in_specs=[
                pl.BlockSpec((1, tm, E), lambda b, si: (b, si, 0)),    # activations: read once
                pl.BlockSpec((3, E, E), lambda b, si: (0, 0, 0)),      # weight: resident, read once
                pl.BlockSpec((3, 1, E), lambda b, si: (0, 0, 0)),      # bias: resident
            ],
            out_specs=pl.BlockSpec((1, H3, tm, head_dim), lambda b, si: (b, 0, si, 0)),
        ),
        compiler_params=pltpu.CompilerParams(
            dimension_semantics=("parallel", "parallel"),
            vmem_limit_bytes=_vmem_limit_bytes(),
        ),
        cost_estimate=pl.CostEstimate(flops=flops, transcendentals=0,
                                      bytes_accessed=bytes_accessed),
    )(x, w3, b3)


# ---------------------------------------------------------------------------
# Kernel 2: flash attention (all heads per step) + one deep fused output projection
# ---------------------------------------------------------------------------
def _flash_mhsa_kernel(q_ref, k_ref, v_ref, wout_ref, bout_ref, o_ref,
                       m_sc, l_sc, acc_sc, ctx_sc, *,
                       num_heads, head_dim, q_tile, kv_tile, seq_len,
                       needs_mask, compute_dtype, probs_dtype):
    ki = pl.program_id(2)
    n_kv = pl.num_programs(2)

    @pl.when(ki == 0)
    def _init():
        m_sc[...] = jnp.full_like(m_sc, -jnp.inf)
        l_sc[...] = jnp.zeros_like(l_sc)
        acc_sc[...] = jnp.zeros_like(acc_sc)

    if needs_mask:
        # One iota/compare per kv step, shared by every head (the column threshold is a
        # scalar subtract); only the trailing kv tiles actually contain padded columns.
        valid = (lax.broadcasted_iota(jnp.int32, (q_tile, kv_tile), 1)
                 < (seq_len - ki * kv_tile))

    for h in range(num_heads):                              # static unroll over heads
        q = q_ref[0, h]                                     # (tq, hd) bf16, pre-scaled
        k = k_ref[0, h]                                     # (tk, hd) bf16
        v = v_ref[0, h]                                     # (tk, hd) bf16
        # scores = q @ k^T without an explicit transpose: contract last dims on the MXU.
        s = lax.dot_general(q, k, (((1,), (1,)), ((), ())),
                            preferred_element_type=jnp.float32)       # (tq, tk) f32
        if needs_mask:
            s = jnp.where(valid, s, _MASK_VALUE)
        m_prev = m_sc[h]
        m_new = jnp.maximum(m_prev, jnp.max(s, axis=-1, keepdims=True))
        alpha = jnp.exp(m_prev - m_new)                                # (tq, 1) f32
        # bf16 probabilities halve EUP/VPU traffic on the score tile (v6e/v7x);
        # running stats (m, l, acc) stay in f32.
        p = jnp.exp((s - m_new).astype(probs_dtype))
        l_sc[h] = alpha * l_sc[h] + jnp.sum(p, axis=-1, keepdims=True,
                                            dtype=jnp.float32)
        acc_sc[h] = alpha * acc_sc[h] + jnp.dot(p.astype(compute_dtype), v,
                                                preferred_element_type=jnp.float32)
        m_sc[h] = m_new

    # TODO(synk): nn.Dropout(0.1) on attention probs is the eval-mode identity; skipped.

    @pl.when(ki == n_kv - 1)
    def _finalize():
        for h in range(num_heads):
            inv_l = pl.reciprocal(l_sc[h], approx=True)                # EUP slot
            ctx_sc[:, h * head_dim:(h + 1) * head_dim] = (
                acc_sc[h] * inv_l).astype(compute_dtype)
        # One deep (tq, E) @ (E, E) projection against the VMEM-resident W_out instead of
        # H shallow hd-deep matmuls + H full-width f32 accumulations.
        out = jnp.dot(ctx_sc[...], wout_ref[...],
                      preferred_element_type=jnp.float32)
        o_ref[0] = (out + bout_ref[...]).astype(o_ref.dtype)


# ---------------------------------------------------------------------------
# Wrapper
# ---------------------------------------------------------------------------
def prepare_params(wqkv, bqkv, wout, bout, *, num_heads, compute_dtype=jnp.bfloat16):
    """One-time weight repacking. In production do this at parameter-load time, not per call."""
    E = wqkv.shape[0]
    hd = E // num_heads
    scale = math.sqrt(hd)
    w5 = wqkv.reshape(E, num_heads, 3, hd)
    wq = (w5[:, :, 0, :] / scale).reshape(E, E)       # fold 1/sqrt(head_dim) into Q
    wk = w5[:, :, 1, :].reshape(E, E)
    wv = w5[:, :, 2, :].reshape(E, E)
    wqkv_r = jnp.stack([wq, wk, wv], axis=0).astype(compute_dtype)     # (3, E, E)
    b5 = bqkv.reshape(num_heads, 3, hd)
    bq = (b5[:, 0, :] / scale).reshape(1, E)
    bk = b5[:, 1, :].reshape(1, E)
    bv = b5[:, 2, :].reshape(1, E)
    bqkv_r = jnp.stack([bq, bk, bv], axis=0).astype(jnp.float32)       # (3, 1, E)
    wout_c = wout.astype(compute_dtype)                                # (E, E)
    bout_c = bout.reshape(1, E).astype(jnp.float32)                    # (1, E)
    return wqkv_r, bqkv_r, wout_c, bout_c


def mhsa_forward(x, wqkv, bqkv, wout, bout, *, num_heads,
                 compute_dtype=jnp.bfloat16, probs_dtype=jnp.bfloat16,
                 q_tile_target=512, kv_tile_target=256):
    """MultiHeadSelfAttention forward. probs_dtype: pass jnp.float32 on v5e (no bf16 VPU/EUP);
    bf16 is the right choice on v6e/v7x."""
    B, S, E = x.shape
    H = num_heads
    assert E % H == 0, "Embedding dimension must be divisible by number of heads."
    hd = E // H

    wqkv_r, bqkv_r, wout_c, bout_c = prepare_params(
        wqkv, bqkv, wout, bout, num_heads=H, compute_dtype=compute_dtype)

    # --- sequence tiling / padding: tq decoupled from tk, tq always a multiple of tk ------
    S8 = _round_up(S, 8)
    if S8 <= kv_tile_target:
        tq = tk = S8
    else:
        tk = kv_tile_target
        tq = min(q_tile_target, _round_up(S8, tk))
    S_pad = _round_up(S8, tq)
    n_q = S_pad // tq
    n_kv = S_pad // tk
    needs_mask = S_pad != S

    x_c = x.astype(compute_dtype)
    if needs_mask:
        x_c = jnp.pad(x_c, ((0, 0), (0, S_pad - S), (0, 0)))

    # --- kernel 1: QKV projection straight into the (B, 3H, S_pad, hd) flash layout -------
    qkv = _qkv_projection(x_c, wqkv_r, bqkv_r, num_heads=H, head_dim=hd, tm=tq)

    # --- kernel 2: flash attention over all heads + deep output projection ----------------
    kernel = functools.partial(
        _flash_mhsa_kernel, num_heads=H, head_dim=hd, q_tile=tq, kv_tile=tk,
        seq_len=S, needs_mask=needs_mask, compute_dtype=compute_dtype,
        probs_dtype=probs_dtype)

    flops = int(4 * B * H * S_pad * S_pad * hd + 2 * B * S_pad * E * E)
    transcendentals = int(B * H * S_pad * S_pad)
    bytes_accessed = int((B * S_pad * E * (1 + 2 * n_q) + E * E) * 2
                         + B * S_pad * E * 4 + E * 4)

    # TODO(synk): on v7x (2 TCs), if B * n_q < 2 the second core idles; a head-split across
    # cores would be needed for that corner case.
    out_pad = pl.pallas_call(
        kernel,
        out_shape=jax.ShapeDtypeStruct((B, S_pad, E), x.dtype),
        grid_spec=pltpu.PrefetchScalarGridSpec(
            num_scalar_prefetch=0,
            grid=(B, n_q, n_kv),
            in_specs=[
                pl.BlockSpec((1, H, tq, hd), lambda b, qi, ki: (b, 0, qi, 0)),  # Q heads
                pl.BlockSpec((1, H, tk, hd), lambda b, qi, ki: (b, 1, ki, 0)),  # K heads
                pl.BlockSpec((1, H, tk, hd), lambda b, qi, ki: (b, 2, ki, 0)),  # V heads
                pl.BlockSpec((E, E), lambda b, qi, ki: (0, 0)),                 # W_out resident
                pl.BlockSpec((1, E), lambda b, qi, ki: (0, 0)),                 # b_out
            ],
            out_specs=pl.BlockSpec((1, tq, E), lambda b, qi, ki: (b, qi, 0)),
            scratch_shapes=[
                pltpu.VMEM((H, tq, 1), jnp.float32),        # running row-max m, per head
                pltpu.VMEM((H, tq, 1), jnp.float32),        # running denom l, per head
                pltpu.VMEM((H, tq, hd), jnp.float32),       # per-head numerator accumulator
                pltpu.VMEM((tq, E), compute_dtype),         # normalized head-major context
            ],
        ),
        compiler_params=pltpu.CompilerParams(
            dimension_semantics=("parallel", "parallel", "arbitrary"),
            vmem_limit_bytes=_vmem_limit_bytes(),
        ),
        cost_estimate=pl.CostEstimate(flops=flops, transcendentals=transcendentals,
                                      bytes_accessed=bytes_accessed),
    )(qkv, qkv, qkv, wout_c, bout_c)

    return out_pad[:, :S, :] if needs_mask else out_pad


# ---------------------------------------------------------------------------
# Pure-JAX reference (mirrors the PyTorch forward, f32)
# ---------------------------------------------------------------------------
def mhsa_reference(x, wqkv, bqkv, wout, bout, *, num_heads):
    B, S, E = x.shape
    hd = E // num_heads
    scale = math.sqrt(hd)
    qkv = x @ wqkv + bqkv                                        # (B, S, 3E)
    qkv = qkv.reshape(B, S, num_heads, 3, hd).transpose(3, 0, 2, 1, 4)
    q, k, v = qkv[0], qkv[1], qkv[2]                             # (B, H, S, hd)
    scores = jnp.einsum('bhsd,bhtd->bhst', q, k) / scale
    probs = jax.nn.softmax(scores, axis=-1)
    out = jnp.einsum('bhst,bhtd->bhsd', probs, v)
    out = out.transpose(0, 2, 1, 3).reshape(B, S, E)
    return out @ wout + bout


def init_params(key, embed_dim):
    """Deterministic init matching nn.Linear shapes (weights stored as (in, out))."""
    k1, k2, k3, k4 = jax.random.split(key, 4)
    bound = 1.0 / math.sqrt(embed_dim)
    wqkv = jax.random.uniform(k1, (embed_dim, 3 * embed_dim), jnp.float32, -bound, bound)
    bqkv = jax.random.uniform(k2, (1, 3 * embed_dim), jnp.float32, -bound, bound)
    wout = jax.random.uniform(k3, (embed_dim, embed_dim), jnp.float32, -bound, bound)
    bout = jax.random.uniform(k4, (1, embed_dim), jnp.float32, -bound, bound)
    return wqkv, bqkv, wout, bout


if __name__ == "__main__":
    B, S, E, H = 2, 8, 32, 4

    key = jax.random.PRNGKey(0)
    kx, kp = jax.random.split(key)
    x = jax.random.normal(kx, (B, S, E), jnp.float32)
    wqkv, bqkv, wout, bout = init_params(kp, E)

    out = mhsa_forward(x, wqkv, bqkv, wout, bout, num_heads=H)
    out = jax.block_until_ready(out)

    ref = mhsa_reference(x, wqkv, bqkv, wout, bout, num_heads=H)
    assert out.shape == (B, S, E)
    # bf16 compute (including bf16 softmax probs) with f32 accumulation -> loosened
    # tolerance vs the f32 reference.
    max_err = float(jnp.max(jnp.abs(out.astype(jnp.float32) - ref)))
    assert jnp.allclose(out.astype(jnp.float32), ref, atol=2.5e-2, rtol=2.5e-2), (
        f"mismatch vs JAX reference (max |err| = {max_err})")

    print("KERNEL_OK")
</pallas_src>

<mosaic_0001>
module attributes {stable_mosaic.version = 11 : i64} {
  func.func @_qkv_proj_kernel(%arg0: i32, %arg1: i32, %arg2: memref<1x8x32xbf16, #tpu.memory_space<vmem>>, %arg3: memref<3x32x32xbf16, #tpu.memory_space<vmem>>, %arg4: memref<3x1x32xf32, #tpu.memory_space<vmem>>, %arg5: memref<1x12x8x8xbf16, #tpu.memory_space<vmem>>) attributes {dimension_semantics = [#tpu.dimension_semantics<parallel>, #tpu.dimension_semantics<parallel>], iteration_bounds = array<i64: 2, 1>, scalar_prefetch = 0 : i64, scratch_operands = 0 : i64, tpu.core_type = #tpu.core_type<tc>, window_params = [{transform_indices = @transform_0, window_bounds = array<i64: 1, 8, 32>}, {pipeline_mode = #tpu.pipeline_mode<synchronous>, transform_indices = @transform_1, window_bounds = array<i64: 3, 32, 32>}, {pipeline_mode = #tpu.pipeline_mode<synchronous>, transform_indices = @transform_2, window_bounds = array<i64: 3, 1, 32>}, {transform_indices = @transform_3, window_bounds = array<i64: 1, 12, 8, 8>}]} {
    %c0 = arith.constant 0 : index
    %c0_0 = arith.constant 0 : index
    %c0_1 = arith.constant 0 : index
    %0 = vector.load %arg2[%c0, %c0_0, %c0_1] : memref<1x8x32xbf16, #tpu.memory_space<vmem>>, vector<1x8x32xbf16>
    %1 = vector.shape_cast %0 : vector<1x8x32xbf16> to vector<8x32xbf16>
    %c0_2 = arith.constant 0 : index
    %c0_3 = arith.constant 0 : index
    %c0_4 = arith.constant 0 : index
    %2 = vector.load %arg3[%c0_2, %c0_3, %c0_4] : memref<3x32x32xbf16, #tpu.memory_space<vmem>>, vector<1x32x32xbf16>
    %3 = vector.shape_cast %2 : vector<1x32x32xbf16> to vector<32x32xbf16>
    %cst = arith.constant dense<0.000000e+00> : vector<8x32xf32>
    %4 = tpu.matmul %1, %3, %cst {dimension_numbers = #tpu.dot_dimension_numbers<[1], [0], [0], [1], [0, 0, 1, 1], [], []>} : vector<8x32xbf16>, vector<32x32xbf16>, vector<8x32xf32> -> vector<8x32xf32>
    %c0_5 = arith.constant 0 : index
    %c0_6 = arith.constant 0 : index
    %c0_7 = arith.constant 0 : index
    %5 = vector.load %arg4[%c0_5, %c0_6, %c0_7] : memref<3x1x32xf32, #tpu.memory_space<vmem>>, vector<1x1x32xf32>
    %6 = vector.shape_cast %5 : vector<1x1x32xf32> to vector<1x32xf32>
    %7 = vector.broadcast %6 : vector<1x32xf32> to vector<8x32xf32>
    %8 = arith.addf %4, %7 : vector<8x32xf32>
    %9 = arith.truncf %8 : vector<8x32xf32> to vector<8x32xbf16>
    %10 = vector.extract_strided_slice %9 {offsets = [0, 0], sizes = [8, 8], strides = [1, 1]} : vector<8x32xbf16> to vector<8x8xbf16>
    %c0_8 = arith.constant 0 : index
    %c0_9 = arith.constant 0 : index
    %c0_10 = arith.constant 0 : index
    %c0_11 = arith.constant 0 : index
    %11 = vector.load %arg5[%c0_8, %c0_9, %c0_10, %c0_11] : memref<1x12x8x8xbf16, #tpu.memory_space<vmem>>, vector<1x1x8x8xbf16>
    %12 = vector.shape_cast %11 : vector<1x1x8x8xbf16> to vector<8x8xbf16>
    %13 = vector.shape_cast %10 : vector<8x8xbf16> to vector<1x1x8x8xbf16>
    tpu.vector_store %arg5[%c0_8, %c0_9, %c0_10, %c0_11], %13 {strides = array<i32>} : memref<1x12x8x8xbf16, #tpu.memory_space<vmem>>, vector<1x1x8x8xbf16>,
    %14 = vector.extract_strided_slice %9 {offsets = [0, 8], sizes = [8, 8], strides = [1, 1]} : vector<8x32xbf16> to vector<8x8xbf16>
    %c0_12 = arith.constant 0 : index
    %c1 = arith.constant 1 : index
    %c0_13 = arith.constant 0 : index
    %c0_14 = arith.constant 0 : index
    %15 = vector.load %arg5[%c0_12, %c1, %c0_13, %c0_14] : memref<1x12x8x8xbf16, #tpu.memory_space<vmem>>, vector<1x1x8x8xbf16>
    %16 = vector.shape_cast %15 : vector<1x1x8x8xbf16> to vector<8x8xbf16>
    %17 = vector.shape_cast %14 : vector<8x8xbf16> to vector<1x1x8x8xbf16>
    tpu.vector_store %arg5[%c0_12, %c1, %c0_13, %c0_14], %17 {strides = array<i32>} : memref<1x12x8x8xbf16, #tpu.memory_space<vmem>>, vector<1x1x8x8xbf16>,
    %18 = vector.extract_strided_slice %9 {offsets = [0, 16], sizes = [8, 8], strides = [1, 1]} : vector<8x32xbf16> to vector<8x8xbf16>
    %c0_15 = arith.constant 0 : index
    %c2 = arith.constant 2 : index
    %c0_16 = arith.constant 0 : index
    %c0_17 = arith.constant 0 : index
    %19 = vector.load %arg5[%c0_15, %c2, %c0_16, %c0_17] : memref<1x12x8x8xbf16, #tpu.memory_space<vmem>>, vector<1x1x8x8xbf16>
    %20 = vector.shape_cast %19 : vector<1x1x8x8xbf16> to vector<8x8xbf16>
    %21 = vector.shape_cast %18 : vector<8x8xbf16> to vector<1x1x8x8xbf16>
    tpu.vector_store %arg5[%c0_15, %c2, %c0_16, %c0_17], %21 {strides = array<i32>} : memref<1x12x8x8xbf16, #tpu.memory_space<vmem>>, vector<1x1x8x8xbf16>,
    %22 = vector.extract_strided_slice %9 {offsets = [0, 24], sizes = [8, 8], strides = [1, 1]} : vector<8x32xbf16> to vector<8x8xbf16>
    %c0_18 = arith.constant 0 : index
    %c3 = arith.constant 3 : index
    %c0_19 = arith.constant 0 : index
    %c0_20 = arith.constant 0 : index
    %23 = vector.load %arg5[%c0_18, %c3, %c0_19, %c0_20] : memref<1x12x8x8xbf16, #tpu.memory_space<vmem>>, vector<1x1x8x8xbf16>
    %24 = vector.shape_cast %23 : vector<1x1x8x8xbf16> to vector<8x8xbf16>
    %25 = vector.shape_cast %22 : vector<8x8xbf16> to vector<1x1x8x8xbf16>
    tpu.vector_store %arg5[%c0_18, %c3, %c0_19, %c0_20], %25 {strides = array<i32>} : memref<1x12x8x8xbf16, #tpu.memory_space<vmem>>, vector<1x1x8x8xbf16>,
    %c1_21 = arith.constant 1 : index
    %c0_22 = arith.constant 0 : index
    %c0_23 = arith.constant 0 : index
    %26 = vector.load %arg3[%c1_21, %c0_22, %c0_23] : memref<3x32x32xbf16, #tpu.memory_space<vmem>>, vector<1x32x32xbf16>
    %27 = vector.shape_cast %26 : vector<1x32x32xbf16> to vector<32x32xbf16>
    %cst_24 = arith.constant dense<0.000000e+00> : vector<8x32xf32>
    %28 = tpu.matmul %1, %27, %cst_24 {dimension_numbers = #tpu.dot_dimension_numbers<[1], [0], [0], [1], [0, 0, 1, 1], [], []>} : vector<8x32xbf16>, vector<32x32xbf16>, vector<8x32xf32> -> vector<8x32xf32>
    %c1_25 = arith.constant 1 : index
    %c0_26 = arith.constant 0 : index
    %c0_27 = arith.constant 0 : index
    %29 = vector.load %arg4[%c1_25, %c0_26, %c0_27] : memref<3x1x32xf32, #tpu.memory_space<vmem>>, vector<1x1x32xf32>
    %30 = vector.shape_cast %29 : vector<1x1x32xf32> to vector<1x32xf32>
    %31 = vector.broadcast %30 : vector<1x32xf32> to vector<8x32xf32>
    %32 = arith.addf %28, %31 : vector<8x32xf32>
    %33 = arith.truncf %32 : vector<8x32xf32> to vector<8x32xbf16>
    %34 = vector.extract_strided_slice %33 {offsets = [0, 0], sizes = [8, 8], strides = [1, 1]} : vector<8x32xbf16> to vector<8x8xbf16>
    %c0_28 = arith.constant 0 : index
    %c4 = arith.constant 4 : index
    %c0_29 = arith.constant 0 : index
    %c0_30 = arith.constant 0 : index
    %35 = vector.load %arg5[%c0_28, %c4, %c0_29, %c0_30] : memref<1x12x8x8xbf16, #tpu.memory_space<vmem>>, vector<1x1x8x8xbf16>
    %36 = vector.shape_cast %35 : vector<1x1x8x8xbf16> to vector<8x8xbf16>
    %37 = vector.shape_cast %34 : vector<8x8xbf16> to vector<1x1x8x8xbf16>
    tpu.vector_store %arg5[%c0_28, %c4, %c0_29, %c0_30], %37 {strides = array<i32>} : memref<1x12x8x8xbf16, #tpu.memory_space<vmem>>, vector<1x1x8x8xbf16>,
    %38 = vector.extract_strided_slice %33 {offsets = [0, 8], sizes = [8, 8], strides = [1, 1]} : vector<8x32xbf16> to vector<8x8xbf16>
    %c0_31 = arith.constant 0 : index
    %c5 = arith.constant 5 : index
    %c0_32 = arith.constant 0 : index
    %c0_33 = arith.constant 0 : index
    %39 = vector.load %arg5[%c0_31, %c5, %c0_32, %c0_33] : memref<1x12x8x8xbf16, #tpu.memory_space<vmem>>, vector<1x1x8x8xbf16>
    %40 = vector.shape_cast %39 : vector<1x1x8x8xbf16> to vector<8x8xbf16>
    %41 = vector.shape_cast %38 : vector<8x8xbf16> to vector<1x1x8x8xbf16>
    tpu.vector_store %arg5[%c0_31, %c5, %c0_32, %c0_33], %41 {strides = array<i32>} : memref<1x12x8x8xbf16, #tpu.memory_space<vmem>>, vector<1x1x8x8xbf16>,
    %42 = vector.extract_strided_slice %33 {offsets = [0, 16], sizes = [8, 8], strides = [1, 1]} : vector<8x32xbf16> to vector<8x8xbf16>
    %c0_34 = arith.constant 0 : index
    %c6 = arith.constant 6 : index
    %c0_35 = arith.constant 0 : index
    %c0_36 = arith.constant 0 : index
    %43 = vector.load %arg5[%c0_34, %c6, %c0_35, %c0_36] : memref<1x12x8x8xbf16, #tpu.memory_space<vmem>>, vector<1x1x8x8xbf16>
    %44 = vector.shape_cast %43 : vector<1x1x8x8xbf16> to vector<8x8xbf16>
    %45 = vector.shape_cast %42 : vector<8x8xbf16> to vector<1x1x8x8xbf16>
    tpu.vector_store %arg5[%c0_34, %c6, %c0_35, %c0_36], %45 {strides = array<i32>} : memref<1x12x8x8xbf16, #tpu.memory_space<vmem>>, vector<1x1x8x8xbf16>,
    %46 = vector.extract_strided_slice %33 {offsets = [0, 24], sizes = [8, 8], strides = [1, 1]} : vector<8x32xbf16> to vector<8x8xbf16>
    %c0_37 = arith.constant 0 : index
    %c7 = arith.constant 7 : index
    %c0_38 = arith.constant 0 : index
    %c0_39 = arith.constant 0 : index
    %47 = vector.load %arg5[%c0_37, %c7, %c0_38, %c0_39] : memref<1x12x8x8xbf16, #tpu.memory_space<vmem>>, vector<1x1x8x8xbf16>
    %48 = vector.shape_cast %47 : vector<1x1x8x8xbf16> to vector<8x8xbf16>
    %49 = vector.shape_cast %46 : vector<8x8xbf16> to vector<1x1x8x8xbf16>
    tpu.vector_store %arg5[%c0_37, %c7, %c0_38, %c0_39], %49 {strides = array<i32>} : memref<1x12x8x8xbf16, #tpu.memory_space<vmem>>, vector<1x1x8x8xbf16>,
    %c2_40 = arith.constant 2 : index
    %c0_41 = arith.constant 0 : index
    %c0_42 = arith.constant 0 : index
    %50 = vector.load %arg3[%c2_40, %c0_41, %c0_42] : memref<3x32x32xbf16, #tpu.memory_space<vmem>>, vector<1x32x32xbf16>
    %51 = vector.shape_cast %50 : vector<1x32x32xbf16> to vector<32x32xbf16>
    %cst_43 = arith.constant dense<0.000000e+00> : vector<8x32xf32>
    %52 = tpu.matmul %1, %51, %cst_43 {dimension_numbers = #tpu.dot_dimension_numbers<[1], [0], [0], [1], [0, 0, 1, 1], [], []>} : vector<8x32xbf16>, vector<32x32xbf16>, vector<8x32xf32> -> vector<8x32xf32>
    %c2_44 = arith.constant 2 : index
    %c0_45 = arith.constant 0 : index
    %c0_46 = arith.constant 0 : index
    %53 = vector.load %arg4[%c2_44, %c0_45, %c0_46] : memref<3x1x32xf32, #tpu.memory_space<vmem>>, vector<1x1x32xf32>
    %54 = vector.shape_cast %53 : vector<1x1x32xf32> to vector<1x32xf32>
    %55 = vector.broadcast %54 : vector<1x32xf32> to vector<8x32xf32>
    %56 = arith.addf %52, %55 : vector<8x32xf32>
    %57 = arith.truncf %56 : vector<8x32xf32> to vector<8x32xbf16>
    %58 = vector.extract_strided_slice %57 {offsets = [0, 0], sizes = [8, 8], strides = [1, 1]} : vector<8x32xbf16> to vector<8x8xbf16>
    %c0_47 = arith.constant 0 : index
    %c8 = arith.constant 8 : index
    %c0_48 = arith.constant 0 : index
    %c0_49 = arith.constant 0 : index
    %59 = vector.load %arg5[%c0_47, %c8, %c0_48, %c0_49] : memref<1x12x8x8xbf16, #tpu.memory_space<vmem>>, vector<1x1x8x8xbf16>
    %60 = vector.shape_cast %59 : vector<1x1x8x8xbf16> to vector<8x8xbf16>
    %61 = vector.shape_cast %58 : vector<8x8xbf16> to vector<1x1x8x8xbf16>
    tpu.vector_store %arg5[%c0_47, %c8, %c0_48, %c0_49], %61 {strides = array<i32>} : memref<1x12x8x8xbf16, #tpu.memory_space<vmem>>, vector<1x1x8x8xbf16>,
    %62 = vector.extract_strided_slice %57 {offsets = [0, 8], sizes = [8, 8], strides = [1, 1]} : vector<8x32xbf16> to vector<8x8xbf16>
    %c0_50 = arith.constant 0 : index
    %c9 = arith.constant 9 : index
    %c0_51 = arith.constant 0 : index
    %c0_52 = arith.constant 0 : index
    %63 = vector.load %arg5[%c0_50, %c9, %c0_51, %c0_52] : memref<1x12x8x8xbf16, #tpu.memory_space<vmem>>, vector<1x1x8x8xbf16>
    %64 = vector.shape_cast %63 : vector<1x1x8x8xbf16> to vector<8x8xbf16>
    %65 = vector.shape_cast %62 : vector<8x8xbf16> to vector<1x1x8x8xbf16>
    tpu.vector_store %arg5[%c0_50, %c9, %c0_51, %c0_52], %65 {strides = array<i32>} : memref<1x12x8x8xbf16, #tpu.memory_space<vmem>>, vector<1x1x8x8xbf16>,
    %66 = vector.extract_strided_slice %57 {offsets = [0, 16], sizes = [8, 8], strides = [1, 1]} : vector<8x32xbf16> to vector<8x8xbf16>
    %c0_53 = arith.constant 0 : index
    %c10 = arith.constant 10 : index
    %c0_54 = arith.constant 0 : index
    %c0_55 = arith.constant 0 : index
    %67 = vector.load %arg5[%c0_53, %c10, %c0_54, %c0_55] : memref<1x12x8x8xbf16, #tpu.memory_space<vmem>>, vector<1x1x8x8xbf16>
    %68 = vector.shape_cast %67 : vector<1x1x8x8xbf16> to vector<8x8xbf16>
    %69 = vector.shape_cast %66 : vector<8x8xbf16> to vector<1x1x8x8xbf16>
    tpu.vector_store %arg5[%c0_53, %c10, %c0_54, %c0_55], %69 {strides = array<i32>} : memref<1x12x8x8xbf16, #tpu.memory_space<vmem>>, vector<1x1x8x8xbf16>,
    %70 = vector.extract_strided_slice %57 {offsets = [0, 24], sizes = [8, 8], strides = [1, 1]} : vector<8x32xbf16> to vector<8x8xbf16>
    %c0_56 = arith.constant 0 : index
    %c11 = arith.constant 11 : index
    %c0_57 = arith.constant 0 : index
    %c0_58 = arith.constant 0 : index
    %71 = vector.load %arg5[%c0_56, %c11, %c0_57, %c0_58] : memref<1x12x8x8xbf16, #tpu.memory_space<vmem>>, vector<1x1x8x8xbf16>
    %72 = vector.shape_cast %71 : vector<1x1x8x8xbf16> to vector<8x8xbf16>
    %73 = vector.shape_cast %70 : vector<8x8xbf16> to vector<1x1x8x8xbf16>
    tpu.vector_store %arg5[%c0_56, %c11, %c0_57, %c0_58], %73 {strides = array<i32>} : memref<1x12x8x8xbf16, #tpu.memory_space<vmem>>, vector<1x1x8x8xbf16>,
    return
  }
  func.func @transform_0(%arg0: i32, %arg1: i32) -> (i32, i32, i32) {
    %c0_i32 = arith.constant 0 : i32
    %c0_i32_0 = arith.constant 0 : i32
    return %arg0, %arg1, %c0_i32 : i32, i32, i32
  }
  func.func @transform_1(%arg0: i32, %arg1: i32) -> (i32, i32, i32) {
    %c0_i32 = arith.constant 0 : i32
    %c0_i32_0 = arith.constant 0 : i32
    %c0_i32_1 = arith.constant 0 : i32
    %c0_i32_2 = arith.constant 0 : i32
    return %c0_i32, %c0_i32_0, %c0_i32_1 : i32, i32, i32
  }
  func.func @transform_2(%arg0: i32, %arg1: i32) -> (i32, i32, i32) {
    %c0_i32 = arith.constant 0 : i32
    %c0_i32_0 = arith.constant 0 : i32
    %c0_i32_1 = arith.constant 0 : i32
    %c0_i32_2 = arith.constant 0 : i32
    return %c0_i32, %c0_i32_0, %c0_i32_1 : i32, i32, i32
  }
  func.func @transform_3(%arg0: i32, %arg1: i32) -> (i32, i32, i32, i32) {
    %c0_i32 = arith.constant 0 : i32
    %c0_i32_0 = arith.constant 0 : i32
    %c0_i32_1 = arith.constant 0 : i32
    return %arg0, %c0_i32, %arg1, %c0_i32_0 : i32, i32, i32, i32
  }
}

</mosaic_0001>

<llo_original>
// kernel: tpu_custom_call.1
$region0: #{tpu_custom_call.1}
  #allocation0 [shape = 'u32[]', space=smem, size = 0x4, offset = 0x4, fixed_abs, tag = 'smem constant byte address 0x4 - core index']
  #allocation1 [shape = 'u32[72,128]{1,0:T(1,128)}', space=vmem, size = 0x9000, scoped, tag = 'internal scratch']
  %s0 = inlined_call_operand.hbm [shape: bf16[2,8,32], index: 0, kind: input, shape index: {}]
  %s1 = inlined_call_operand.hbm [shape: bf16[3,32,32], index: 1, kind: input, shape index: {}]
  %s2 = inlined_call_operand.hbm [shape: f32[3,1,32], index: 2, kind: input, shape index: {}]
  %s3 = inlined_call_operand.vmem [shape: bf16[2,12,8,8], index: 3, kind: output, shape index: {}]
  %s4 = sld [smem:[#allocation0]]
  $region57: #{tpu_custom_call.1} parent=0
    _
  %s6 = ssub.s32 1, %s4
  %s7 = scalar_select 0, %s6, %s4
  $region1: #{tpu_custom_call.1} parent=0
    #allocation2 [shape = 'u8[4096]{0}', space=vmem, size = 0x1000, scoped, tag = 'input window, operand 0']
    #allocation3 [shape = 's32[2]{0}', space=sflag, size = 0x8, scoped, tag = 'scoped memory for tpu_custom_call.1']
    #allocation4 [shape = 'u8[24576]{0}', space=vmem, size = 0x6000, scoped, tag = 'input window, operand 1, single buffered']
    #allocation5 [shape = 's32[1]{0}', space=sflag, size = 0x4, scoped, tag = 'scoped memory for tpu_custom_call.1']
    #allocation6 [shape = 'u8[1536]{0}', space=vmem, size = 0x800, scoped, tag = 'input window, operand 2, single buffered']
    %8 = vsyncpa [#allocation3], 0
    %s9 = scalar_lea.sflag [#allocation3], 1
    %10 = vsyncpa %s9, 0
    %11 = vsyncpa [#allocation5], 0
    loop: start=0, step=1, limit=4
    $region2: #{tpu_custom_call.1} parent=1 // loop_pre_header
      _
    $region3: #{tpu_custom_call.1} parent=1 // loop_header
      %s13 = sphi 0, %s17
      %p14 = scmp.ge.s32.totalorder %s13, 4
      %s20 = sphi 0, %s32
      %s21 = sphi 0, %s28
      %s22 = sphi 0, %s20
      %s23 = sphi 0, %s21
      %s24 = sphi 0, %s22
      %s25 = sphi 0, %s23
      %s37 = sphi 0, %s39
      %s40 = sphi 0, %s37
      %s41 = sphi 0, %s40
      %s57 = sphi 0, %s41
      %s61 = sphi 0, %s61
      %s63 = sphi 0, %s61
      %s64 = sphi 0, %s63
      %s78 = sphi 0, %s64
      %s82 = sphi 0, %s82
      %s84 = sphi 0, %s82
      %s85 = sphi 0, %s84
      %s99 = sphi 0, %s85
      %s107 = sphi 0, %s109
      %s110 = sphi 0, %s107
      %s111 = sphi 0, %s110
      %s127 = sphi 0, %s111
    $region4: #{tpu_custom_call.1} parent=1 // loop_header_branch
      %16 = sbr.rel (%p14) target = $region8
    $region5: #{tpu_custom_call.1} parent=1 // loop_body
      %s18 = ssub.s32 %s13, 1
      %s19 = ssub.s32 %s13, 2
      %s26 = sadd.s32 1, %s21
      %p27 = scmp.ge.s32.totalorder %s26, 1
      %s28 = scalar_select %p27, 0, %s26
      %s29 = sadd.s32 1, %s20
      %s30 = scalar_select %p27, %s29, %s20
      %p31 = scmp.ge.s32.totalorder %s30, 2
      %s32 = scalar_select %p31, 0, %s30
      %s33 = ssub.s32 %s20, %s32
      %s34 = ssub.s32 %s21, %s28
      %s35 = sor.u32 %s33, %s34
      %p36 = scmp.eq.s32.totalorder %s35, 0
      %s38 = sadd.s32 %s37, 1
      %s39 = scalar_select %p36, %s37, %s38
      %p42 = pneg %p36
      %p43 = scmp.eq.s32.totalorder %s13, 1
      %p44 = por %p42, %p43
      %p45 = scmp.ne.s32.totalorder %s37, %s40
      %p46 = scmp.eq.s32.totalorder %s13, 0
      %p47 = por %p45, %p46
      %p48 = scmp.ne.s32.totalorder %s37, %s40
      %p49 = scmp.eq.s32.totalorder %s18, 1
      %p50 = por %p48, %p49
      %p51 = scmp.ne.s32.totalorder %s40, %s41
      %p52 = scmp.eq.s32.totalorder %s18, 0
      %p53 = por %p51, %p52
      %p54 = scmp.ne.s32.totalorder %s40, %s41
      %p55 = scmp.eq.s32.totalorder %s19, 1
      %p56 = por %p54, %p55
      %p58 = scmp.ne.s32.totalorder %s41, %s57
      %p59 = scmp.eq.s32.totalorder %s19, 0
      %p60 = por %p58, %p59
      %s62 = sadd.s32 %s61, 1
      %p65 = scmp.eq.s32.totalorder %s13, 1
      %p66 = scmp.ne.s32.totalorder %s61, %s63
      %p67 = scmp.eq.s32.totalorder %s13, 0
      %p68 = por %p66, %p67
      %p69 = scmp.ne.s32.totalorder %s61, %s63
      %p70 = scmp.eq.s32.totalorder %s18, 1
      %p71 = por %p69, %p70
      %p72 = scmp.ne.s32.totalorder %s63, %s64
      %p73 = scmp.eq.s32.totalorder %s18, 0
      %p74 = por %p72, %p73
      %p75 = scmp.ne.s32.totalorder %s63, %s64
      %p76 = scmp.eq.s32.totalorder %s19, 1
      %p77 = por %p75, %p76
      %p79 = scmp.ne.s32.totalorder %s64, %s78
      %p80 = scmp.eq.s32.totalorder %s19, 0
      %p81 = por %p79, %p80
      %s83 = sadd.s32 %s82, 1
      %p86 = scmp.eq.s32.totalorder %s13, 1
      %p87 = scmp.ne.s32.totalorder %s82, %s84
      %p88 = scmp.eq.s32.totalorder %s13, 0
      %p89 = por %p87, %p88
      %p90 = scmp.ne.s32.totalorder %s82, %s84
      %p91 = scmp.eq.s32.totalorder %s18, 1
      %p92 = por %p90, %p91
      %p93 = scmp.ne.s32.totalorder %s84, %s85
      %p94 = scmp.eq.s32.totalorder %s18, 0
      %p95 = por %p93, %p94
      %p96 = scmp.ne.s32.totalorder %s84, %s85
      %p97 = scmp.eq.s32.totalorder %s19, 1
      %p98 = por %p96, %p97
      %p100 = scmp.ne.s32.totalorder %s85, %s99
      %p101 = scmp.eq.s32.totalorder %s19, 0
      %p102 = por %p100, %p101
      %s103 = ssub.s32 %s20, %s32
      %s104 = ssub.s32 %s21, %s28
      %s105 = sor.u32 %s103, %s104
      %p106 = scmp.eq.s32.totalorder %s105, 0
      %s108 = sadd.s32 %s107, 1
      %s109 = scalar_select %p106, %s107, %s108
      %p112 = pneg %p106
      %p113 = scmp.eq.s32.totalorder %s13, 1
      %p114 = por %p112, %p113
      %p115 = scmp.ne.s32.totalorder %s107, %s110
      %p116 = scmp.eq.s32.totalorder %s13, 0
      %p117 = por %p115, %p116
      %p118 = scmp.ne.s32.totalorder %s107, %s110
      %p119 = scmp.eq.s32.totalorder %s18, 1
      %p120 = por %p118, %p119
      %p121 = scmp.ne.s32.totalorder %s110, %s111
      %p122 = scmp.eq.s32.totalorder %s18, 0
      %p123 = por %p121, %p122
      %p124 = scmp.ne.s32.totalorder %s110, %s111
      %p125 = scmp.eq.s32.totalorder %s19, 1
      %p126 = por %p124, %p125
      %p128 = scmp.ne.s32.totalorder %s111, %s127
      %p129 = scmp.eq.s32.totalorder %s19, 0
      %p130 = por %p128, %p129
      %p131 = scmp.le.s32.totalorder 1, %s13
      %p132 = scmp.lt.s32.totalorder %s13, 3
      %p133 = pnand %p131, %p132
      %p134 = pneg %p133
      // Predicated region
      $region9: #{tpu_custom_call.1} parent=5 // pred_check
        _
      $region10: #{tpu_custom_call.1} parent=5 // pred_check_branch
        %136 = sbr.rel (%p133) target = $region12
      $region11: #{tpu_custom_call.1} parent=5 // pred_region
        %s137 = ssub.s32 %s13, 1
        // Predicated region
        $region13: #{tpu_custom_call.1} parent=11 // pred_check
          %p138 = pneg %p74
        $region14: #{tpu_custom_call.1} parent=11 // pred_check_branch
          %140 = sbr.rel (%p138) target = $region16
        $region15: #{tpu_custom_call.1} parent=11 // pred_region
          %142 = vsyncadd [#allocation5], 0
          %s143 = sshll.u32 %s1, 4
          %s144 = int_to_ptr.hbm [resolvable:$true] %s143
          %s145 = sshll.u32 [#allocation4], 4
          %s146 = int_to_ptr.vmem [resolvable:$true] %s145
          %151 = dma.hbm_to_vmem [thread:$0]  %s144, 768, %s146, [#allocation5], 64, 64, 4
        $region16: #{tpu_custom_call.1} parent=11 // pred_fallthru
          _
        // Predicated region
        $region17: #{tpu_custom_call.1} parent=11 // pred_check
          %p152 = pneg %p95
        $region18: #{tpu_custom_call.1} parent=11 // pred_check_branch
          %154 = sbr.rel (%p152) target = $region20
        $region19: #{tpu_custom_call.1} parent=11 // pred_region
          %156 = vsyncadd [#allocation5], 0
          %s157 = sshll.u32 %s2, 4
          %s158 = int_to_ptr.hbm [resolvable:$true] %s157
          %s159 = sshll.u32 [#allocation6], 4
          %s160 = int_to_ptr.vmem [resolvable:$true] %s159
          %165 = dma.hbm_to_vmem [thread:$0]  %s158, 48, %s160, [#allocation5], 16, 16, 1
        $region20: #{tpu_custom_call.1} parent=11 // pred_fallthru
          _
      $region12: #{tpu_custom_call.1} parent=5 // pred_fallthru
        _
      %p166 = scmp.lt.s32.totalorder %s13, 2
      // Predicated region
      $region21: #{tpu_custom_call.1} parent=5 // pred_check
        %p167 = pneg %p166
      $region22: #{tpu_custom_call.1} parent=5 // pred_check_branch
        %169 = sbr.rel (%p167) target = $region24
      $region23: #{tpu_custom_call.1} parent=5 // pred_region
        // Predicated region
        $region25: #{tpu_custom_call.1} parent=23 // pred_check
          %p170 = pneg %p47
        $region26: #{tpu_custom_call.1} parent=23 // pred_check_branch
          %172 = sbr.rel (%p170) target = $region28
        $region27: #{tpu_custom_call.1} parent=23 // pred_region
          %s173 = sand.u32 %s37, 1
          %s174 = scalar_lea.sflag [#allocation3], %s173
          %s175 = sand.u32 %s37, 1
          %s176 = smul.addr %s175, 4
          %s177 = scalar_lea.vmem [#allocation2], %s176
          %179 = vsyncadd %s174, 0
          %s180 = sadd.s32 %s21, %s20
          %s181 = smul.addr %s180, 4
          %s182 = scalar_lea.hbm %s0, %s181
          %s184 = sshll.u32 %s182, 4
          %s185 = int_to_ptr.hbm [resolvable:$true] %s184
          %s186 = sshll.u32 %s177, 4
          %s187 = int_to_ptr.vmem [resolvable:$true] %s186
          %189 = dma.hbm_to_vmem [thread:$0]  %s185, 64, %s187, %s174
        $region28: #{tpu_custom_call.1} parent=23 // pred_fallthru
          _
      $region24: #{tpu_custom_call.1} parent=5 // pred_fallthru
        _
      %p190 = scmp.le.s32.totalorder 1, %s13
      %p191 = scmp.lt.s32.totalorder %s13, 3
      %p192 = pnand %p190, %p191
      %p193 = pneg %p192
      // Predicated region
      $region29: #{tpu_custom_call.1} parent=5 // pred_check
        _
      $region30: #{tpu_custom_call.1} parent=5 // pred_check_branch
        %195 = sbr.rel (%p192) target = $region32
      $region31: #{tpu_custom_call.1} parent=5 // pred_region
        %s196 = ssub.s32 %s13, 1
        %s197 = sand.u32 %s40, 1
        %s198 = scalar_lea.sflag [#allocation3], %s197
        %s199 = sand.u32 %s40, 1
        %s200 = smul.addr %s199, 4
        %s201 = scalar_lea.vmem [#allocation2], %s200
        // Predicated region
        $region33: #{tpu_custom_call.1} parent=31 // pred_check
          %p202 = pneg %p53
        $region34: #{tpu_custom_call.1} parent=31 // pred_check_branch
          %204 = sbr.rel (%p202) target = $region36
        $region35: #{tpu_custom_call.1} parent=31 // pred_region
          %206 = dma.done %s198, 64
        $region36: #{tpu_custom_call.1} parent=31 // pred_fallthru
          _
        // Predicated region
        $region37: #{tpu_custom_call.1} parent=31 // pred_check
          %p207 = pneg %p74
        $region38: #{tpu_custom_call.1} parent=31 // pred_check_branch
          %209 = sbr.rel (%p207) target = $region40
        $region39: #{tpu_custom_call.1} parent=31 // pred_region
          %211 = dma.done [#allocation5], 768
        $region40: #{tpu_custom_call.1} parent=31 // pred_fallthru
          _
        // Predicated region
        $region41: #{tpu_custom_call.1} parent=31 // pred_check
          %p212 = pneg %p95
        $region42: #{tpu_custom_call.1} parent=31 // pred_check_branch
          %214 = sbr.rel (%p212) target = $region44
        $region43: #{tpu_custom_call.1} parent=31 // pred_region
          %216 = dma.done [#allocation5], 48
        $region44: #{tpu_custom_call.1} parent=31 // pred_fallthru
          _
        %s217 = sand.u32 %s40, 1
        %s218 = scalar_lea.sflag [#allocation3], %s217
        %s219 = sand.u32 %s40, 1
        %s220 = smul.addr %s219, 4
        %s221 = scalar_lea.vmem [#allocation2], %s220
        %p222 = pneg %p53
        %p223 = pneg %p50
        %p224 = pneg %p74
        %p225 = pneg %p71
        %p226 = pneg %p95
        %p227 = pneg %p92
        %p228 = pneg %p123
        %p229 = pneg %p120
        %p230 = scmp.lt.s32.totalorder %s22, 1
        %s231 = scalar_select %p230, %s22, 1
        %p232 = scmp.lt.s32.totalorder %s23, 0
        %s233 = scalar_select %p232, %s23, 0
        %s234 = smul.addr %s231, 12
        %s235 = sadd.s32 %s233, %s234
        %s236 = smul.addr %s235, 4
        %s237 = scalar_lea.vmem %s3, %s236
        %p238 = scmp.lt.s32.totalorder %s22, 1
        %s239 = scalar_select %p238, %s22, 1
        %p240 = scmp.lt.s32.totalorder %s23, 0
        %s241 = scalar_select %p240, %s23, 0
        %s242 = smul.addr %s239, 12
        %s243 = sadd.s32 %s241, %s242
        %s244 = smul.addr %s243, 4
        %s245 = scalar_lea.vmem %s3, %s244
        %v247 = vld [vmem:[%s201] sm:$0xf]
        %v248 = vld [vmem:[#allocation4] sm:$0xf]
        %v249 = vld [vmem:[#allocation4 + $0x4] sm:$0xf]
        %v250 = vld [vmem:[#allocation4 + $0x8] sm:$0xf]
        %v251 = vld [vmem:[#allocation4 + $0xc] sm:$0xf]
        %v252 = vld [vmem:[#allocation6] sm:$0x1]
        %v254 = vperm.slane %v252, 0
        %v260 = vunpack.c.l.b16 %v248
        %v261 = vunpack.c.l.b16 %v249
        %v262 = vunpack.c.l.b16 %v250
        %v263 = vunpack.c.l.b16 %v251
        %v264 = vpack.c.b16 %v261, %v260
        %v265 = vpack.c.b16 %v263, %v262
        %vm268 = vcmask 261120
        %v270 = vsel %vm268, %v247, 0
        %272 = vmatpush.bf16.msra.mxu0 0
        %273 = vmatpush.bf16.msra.mxu0 0
        %274 = vmatpush.bf16.msra.mxu0 0
        %275 = vmatpush.bf16.msra.mxu0 0
        %276 = vmatpush.bf16.msra.mxu0 0
        %277 = vmatpush.bf16.msra.mxu0 0
        %278 = vmatpush.bf16.msra.mxu0 %v265
        %279 = vmatpush.bf16.msra.mxu0 %v264
        %280 = vmatmul.bf16.gmra.mxu0 %v270
        %v281 = vpop.f32.mrf.mxu0
        %v282 = vadd.f32 %v254, %v281
        %v283 = vpop.f32.mrf.mxu0
        %284 = vdwg.mxu0
        %v285 = vpack.c.bf16 %v282, %v282
        %vm286 = vcmask 60416
        %287 = vst.msk [vmem:[%s245] sm:$0xf] %vm286, %v285
        %289 = vrot.lane.b32.xlu0 %v285, 120
        %v290 = vpop.permute.xlu0 %289
        %s292 = scalar_lea.vmem %s245, 4
        %293 = vst.msk [vmem:[%s292] sm:$0xf] %vm286, %v290
        %294 = vrot.lane.b32.xlu0 %v285, 112
        %v295 = vpop.permute.xlu0 %294
        %s297 = scalar_lea.vmem %s245, 8
        %298 = vst.msk [vmem:[%s297] sm:$0xf] %vm286, %v295
        %299 = vrot.lane.b32.xlu0 %v285, 104
        %v300 = vpop.permute.xlu0 %299
        %s302 = scalar_lea.vmem %s245, 12
        %303 = vst.msk [vmem:[%s302] sm:$0xf] %vm286, %v300
        %s304 = scalar_lea.vmem [#allocation4], 16
        %v305 = vld [vmem:[%s304] sm:$0xf]
        %v306 = vld [vmem:[%s304 + $0x4] sm:$0xf]
        %v307 = vld [vmem:[%s304 + $0x8] sm:$0xf]
        %v308 = vld [vmem:[%s304 + $0xc] sm:$0xf]
        %s309 = scalar_lea.vmem [#allocation6], 1
        %v310 = vld [vmem:[%s309] sm:$0x1]
        %v312 = vperm.slane %v310, 0
        %v318 = vunpack.c.l.b16 %v305
        %v319 = vunpack.c.l.b16 %v306
        %v320 = vunpack.c.l.b16 %v307
        %v321 = vunpack.c.l.b16 %v308
        %v322 = vpack.c.b16 %v319, %v318
        %v323 = vpack.c.b16 %v321, %v320
        %326 = vmatpush.bf16.msra.mxu0 0
        %327 = vmatpush.bf16.msra.mxu0 0
        %328 = vmatpush.bf16.msra.mxu0 0
        %329 = vmatpush.bf16.msra.mxu0 0
        %330 = vmatpush.bf16.msra.mxu0 0
        %331 = vmatpush.bf16.msra.mxu0 0
        %332 = vmatpush.bf16.msra.mxu0 %v323
        %333 = vmatpush.bf16.msra.mxu0 %v322
        %334 = vmatmul.bf16.gmra.mxu0 %v270
        %v335 = vpop.f32.mrf.mxu0
        %v336 = vadd.f32 %v312, %v335
        %v337 = vpop.f32.mrf.mxu0
        %338 = vdwg.mxu0
        %v339 = vpack.c.bf16 %v336, %v336
        %s340 = scalar_lea.vmem %s245, 16
        %341 = vst.msk [vmem:[%s340] sm:$0xf] %vm286, %v339
        %343 = vrot.lane.b32.xlu0 %v339, 120
        %v344 = vpop.permute.xlu0 %343
        %s346 = scalar_lea.vmem %s245, 20
        %347 = vst.msk [vmem:[%s346] sm:$0xf] %vm286, %v344
        %348 = vrot.lane.b32.xlu0 %v339, 112
        %v349 = vpop.permute.xlu0 %348
        %s351 = scalar_lea.vmem %s245, 24
        %352 = vst.msk [vmem:[%s351] sm:$0xf] %vm286, %v349
        %353 = vrot.lane.b32.xlu0 %v339, 104
        %v354 = vpop.permute.xlu0 %353
        %s356 = scalar_lea.vmem %s245, 28
        %357 = vst.msk [vmem:[%s356] sm:$0xf] %vm286, %v354
        %s358 = scalar_lea.vmem [#allocation4], 32
        %v359 = vld [vmem:[%s358] sm:$0xf]
        %v360 = vld [vmem:[%s358 + $0x4] sm:$0xf]
        %v361 = vld [vmem:[%s358 + $0x8] sm:$0xf]
        %v362 = vld [vmem:[%s358 + $0xc] sm:$0xf]
        %s363 = scalar_lea.vmem [#allocation6], 2
        %v364 = vld [vmem:[%s363] sm:$0x1]
        %v366 = vperm.slane %v364, 0
        %v372 = vunpack.c.l.b16 %v359
        %v373 = vunpack.c.l.b16 %v360
        %v374 = vunpack.c.l.b16 %v361
        %v375 = vunpack.c.l.b16 %v362
        %v376 = vpack.c.b16 %v373, %v372
        %v377 = vpack.c.b16 %v375, %v374
        %380 = vmatpush.bf16.msra.mxu0 0
        %381 = vmatpush.bf16.msra.mxu0 0
        %382 = vmatpush.bf16.msra.mxu0 0
        %383 = vmatpush.bf16.msra.mxu0 0
        %384 = vmatpush.bf16.msra.mxu0 0
        %385 = vmatpush.bf16.msra.mxu0 0
        %386 = vmatpush.bf16.msra.mxu0 %v377
        %387 = vmatpush.bf16.msra.mxu0 %v376
        %388 = vmatmul.bf16.gmra.mxu0 %v270
        %v389 = vpop.f32.mrf.mxu0
        %v390 = vadd.f32 %v366, %v389
        %v391 = vpop.f32.mrf.mxu0
        %392 = vdwg.mxu0
        %v393 = vpack.c.bf16 %v390, %v390
        %s394 = scalar_lea.vmem %s245, 32
        %395 = vst.msk [vmem:[%s394] sm:$0xf] %vm286, %v393
        %397 = vrot.lane.b32.xlu0 %v393, 120
        %v398 = vpop.permute.xlu0 %397
        %s400 = scalar_lea.vmem %s245, 36
        %401 = vst.msk [vmem:[%s400] sm:$0xf] %vm286, %v398
        %402 = vrot.lane.b32.xlu0 %v393, 112
        %v403 = vpop.permute.xlu0 %402
        %s405 = scalar_lea.vmem %s245, 40
        %406 = vst.msk [vmem:[%s405] sm:$0xf] %vm286, %v403
        %407 = vrot.lane.b32.xlu0 %v393, 104
        %v408 = vpop.permute.xlu0 %407
        %s410 = scalar_lea.vmem %s245, 44
        %411 = vst.msk [vmem:[%s410] sm:$0xf] %vm286, %v408
        %p412 = scmp.lt.s32.totalorder %s22, 1
        %s413 = scalar_select %p412, %s22, 1
        %p414 = scmp.lt.s32.totalorder %s23, 0
        %s415 = scalar_select %p414, %s23, 0
        %s416 = smul.addr %s413, 12
        %s417 = sadd.s32 %s415, %s416
        %s418 = smul.addr %s417, 4
        %s419 = scalar_lea.vmem %s3, %s418
        // Predicated region
        $region45: #{tpu_custom_call.1} parent=31 // pred_check
          %p420 = pneg %p120
        $region46: #{tpu_custom_call.1} parent=31 // pred_check_branch
          %422 = sbr.rel (%p420) target = $region48
        $region47: #{tpu_custom_call.1} parent=31 // pred_region
          _
        $region48: #{tpu_custom_call.1} parent=31 // pred_fallthru
          _
      $region32: #{tpu_custom_call.1} parent=5 // pred_fallthru
        _
      %p423 = scmp.le.s32.totalorder 2, %s13
      // Predicated region
      $region49: #{tpu_custom_call.1} parent=5 // pred_check
        %p424 = pneg %p423
      $region50: #{tpu_custom_call.1} parent=5 // pred_check_branch
        %426 = sbr.rel (%p424) target = $region52
      $region51: #{tpu_custom_call.1} parent=5 // pred_region
        %s427 = ssub.s32 %s13, 2
        // Predicated region
        $region53: #{tpu_custom_call.1} parent=51 // pred_check
          %p428 = pneg %p126
        $region54: #{tpu_custom_call.1} parent=51 // pred_check_branch
          %430 = sbr.rel (%p428) target = $region56
        $region55: #{tpu_custom_call.1} parent=51 // pred_region
          %p431 = scmp.lt.s32.totalorder %s24, 1
          %s432 = scalar_select %p431, %s24, 1
          %p433 = scmp.lt.s32.totalorder %s25, 0
          %s434 = scalar_select %p433, %s25, 0
          %s435 = smul.addr %s432, 12
          %s436 = sadd.s32 %s434, %s435
          %s437 = smul.addr %s436, 4
          %s438 = scalar_lea.vmem %s3, %s437
        $region56: #{tpu_custom_call.1} parent=51 // pred_fallthru
          _
      $region52: #{tpu_custom_call.1} parent=5 // pred_fallthru
        _
    $region6: #{tpu_custom_call.1} parent=1 // loop_footer
      %s17 = sadd.s32 1, %s13
    $region7: #{tpu_custom_call.1} parent=1 // loop_footer_branch
      %12 = sbr.rel target = $region3
    $region8: #{tpu_custom_call.1} parent=1 // loop_exit
      _
    %439 = vsyncpa [#allocation3], 1
    %s440 = scalar_lea.sflag [#allocation3], 1
    %441 = vsyncpa %s440, 1
    %442 = vsyncpa [#allocation5], 1

</llo_original>
